<compile_context>
chip_gen: v7x
topology: tpu7x:2x2x1
jax: 0.10.0
libtpu: 0.0.40
codegen_flags: <defaults>
</compile_context>

<pallas_src>
import math

import jax
import jax.numpy as jnp
from jax.experimental import pallas as pl
from jax.experimental.pallas import tpu as pltpu


_TARGET_BLOCK_ELEMS = 512 * 1024      # ~2 MiB of f32 per output block


def _pick_row_tile(rows, row_elems):
    """Row-tile: ~1-2 MiB f32 blocks, multiple of 8 (or == rows), and at
    least 2 grid steps when there is enough work (v7x megacore)."""
    t = max(8, (_TARGET_BLOCK_ELEMS // row_elems) // 8 * 8)
    half = max(8, ((rows + 1) // 2) // 8 * 8)
    tile = min(t, half)
    if tile >= rows:
        tile = rows                    # full-extent block: always a legal shape
    return tile


# ---------------------------------------------------------------------------
# Packed (lane-dense) path: width = pack * depth lanes per physical row, with
# pack = 128 // gcd(depth, 128)  (so width is a multiple of 128).
# Used for depth <= 256 with width <= 2048: every store/DMA is full-width and
# HBM writes are exactly the useful bytes; (N, depth) is a free reshape.
# ---------------------------------------------------------------------------
def _one_hot_packed_kernel(idx_ref, e_ref, lanes_ref, out_ref):
    # idx_ref  : (TM, pack) int32  -- `pack` logical indices per physical row
    # e_ref    : (pack, W)  f32    -- E[j, l] = 1.0 iff l // depth == j
    # lanes_ref: (1, W)     f32    -- lanes[0, l] = l % depth
    # out_ref  : (TM, W)    f32
    idx = idx_ref[...]
    pack = idx.shape[1]
    depth = out_ref.shape[1] // pack

    # Out-of-range / pad indices -> sentinel `depth`, which never equals any
    # lane's (l % depth) value -> all-zero logical row. Values <= 256 are
    # exact in bf16/f32, so the MXU expansion below is exact.
    idx_f = jnp.where((idx >= 0) & (idx < depth), idx, depth).astype(jnp.float32)

    # MXU expansion (otherwise-idle unit): tgt[r, l] = idx_f[r, l // depth].
    tgt = jnp.dot(idx_f, e_ref[...], preferred_element_type=jnp.float32)

    # Single VPU compare + cast per output element.
    out_ref[...] = (tgt == lanes_ref[...]).astype(out_ref.dtype)


def _one_hot_packed(idx, n, depth, pack, width):
    m = -(-n // pack)                               # physical rows
    n_pad = m * pack
    if n_pad != n:                                  # tiny (< pack) index pad only
        idx = jnp.pad(idx, (0, n_pad - n), constant_values=-1)
    idx2 = idx.reshape(m, pack)

    tile_m = _pick_row_tile(m, width)
    grid_m = pl.cdiv(m, tile_m)

    # Constant expansion matrix + lane pattern, built once in the wrapper
    # (fetched once by Pallas since their block index never changes).
    l = jnp.arange(width, dtype=jnp.int32)
    e = (l[None, :] // depth ==
         jnp.arange(pack, dtype=jnp.int32)[:, None]).astype(jnp.float32)
    lanes = (l % depth).astype(jnp.float32)[None, :]

    out = pl.pallas_call(
        _one_hot_packed_kernel,
        out_shape=jax.ShapeDtypeStruct((m, width), jnp.float32),
        grid_spec=pltpu.PrefetchScalarGridSpec(
            num_scalar_prefetch=0,
            grid=(grid_m,),
            in_specs=[
                pl.BlockSpec((tile_m, pack), lambda i: (i, 0)),
                pl.BlockSpec((pack, width), lambda i: (0, 0)),
                pl.BlockSpec((1, width), lambda i: (0, 0)),
            ],
            out_specs=pl.BlockSpec((tile_m, width), lambda i: (i, 0)),
        ),
        compiler_params=pltpu.CompilerParams(
            dimension_semantics=("parallel",)),
        cost_estimate=pl.CostEstimate(
            flops=2 * m * width * pack,
            transcendentals=0,
            bytes_accessed=m * width * 4 + m * pack * 4 + (pack + 1) * width * 4),
    )(idx2, e, lanes)

    full = out.reshape(m * pack, depth)             # free row-major reshape
    if n_pad == n:
        return full
    return full[:n]                                 # small tail copy only if n % pack != 0


# ---------------------------------------------------------------------------
# Tiled fallback for large depths: writes the exact (N, depth) array.
# Whole-row depth blocks when a row fits (<= 32 KiB); else 2048-lane cdiv
# blocks (ragged last block handled by Pallas -> no padding, no slicing).
# ---------------------------------------------------------------------------
def _one_hot_tiled_kernel(idx_ref, out_ref):
    tn, td = out_ref.shape
    col0 = pl.program_id(1) * td
    cols = col0 + jax.lax.broadcasted_iota(jnp.int32, (tn, td), 1)
    out_ref[...] = (cols == idx_ref[...]).astype(out_ref.dtype)


def _one_hot_tiled(idx, n, depth):
    if depth * 4 <= 32 * 1024:
        tile_d = depth                              # full row per block (legal: full dim)
    else:
        tile_d = 2048                               # multiple of 128, cdiv over depth
    tile_n = _pick_row_tile(n, tile_d)
    idx2 = idx.reshape(n, 1)

    out = pl.pallas_call(
        _one_hot_tiled_kernel,
        out_shape=jax.ShapeDtypeStruct((n, depth), jnp.float32),
        grid_spec=pltpu.PrefetchScalarGridSpec(
            num_scalar_prefetch=0,
            grid=(pl.cdiv(n, tile_n), pl.cdiv(depth, tile_d)),
            in_specs=[pl.BlockSpec((tile_n, 1), lambda i, j: (i, 0))],
            out_specs=pl.BlockSpec((tile_n, tile_d), lambda i, j: (i, j)),
        ),
        compiler_params=pltpu.CompilerParams(
            dimension_semantics=("parallel", "parallel")),
        cost_estimate=pl.CostEstimate(
            flops=0, transcendentals=0,
            bytes_accessed=n * depth * 4 + n * 4),
    )(idx2)
    return out


# ---------------------------------------------------------------------------
# Public wrapper
# ---------------------------------------------------------------------------
def one_hot(x_in, depth):
    """Pallas equivalent of One_Hot(depth)(x_in).

    x_in: 1-D array of indices (any int/float dtype; truncated like .long()).
    Returns: (N, depth) float32 one-hot matrix.
    Out-of-range / negative indices yield an all-zero row (torch would raise).
    """
    if depth <= 0:
        raise ValueError(f"depth must be positive, got {depth}")
    idx = jnp.asarray(x_in).reshape(-1).astype(jnp.int32)   # .long()-style cast
    n = idx.shape[0]
    if n == 0:
        return jnp.zeros((0, depth), jnp.float32)

    g = math.gcd(depth, 128)
    pack = 128 // g
    width = pack * depth
    # Packed path for small depths (exact in bf16, bounded expansion matrix).
    if pack >= 2 and width <= 2048 and depth <= 256:
        return _one_hot_packed(idx, n, depth, pack, width)
    return _one_hot_tiled(idx, n, depth)


if __name__ == "__main__":
    key = jax.random.PRNGKey(0)

    # 1) Packed path: depth divides 128, N a multiple of pack (fully free reshape).
    depth, n = 16, 8
    x = jax.random.randint(key, (n,), 0, depth, dtype=jnp.int32)
    out = jax.block_until_ready(one_hot(x, depth))
    ref = jnp.eye(depth, dtype=jnp.float32)[x]
    assert out.shape == (n, depth)
    assert out.dtype == jnp.float32
    assert jnp.array_equal(out, ref)

    # 2) Packed path with a ragged row tail (N % pack != 0).
    depth2, n2 = 16, 11
    x2 = jax.random.randint(jax.random.PRNGKey(1), (n2,), 0, depth2, dtype=jnp.int32)
    out2 = jax.block_until_ready(one_hot(x2, depth2))
    assert jnp.array_equal(out2, jnp.eye(depth2, dtype=jnp.float32)[x2])

    # 3) Packed path, depth does NOT divide 128 (lcm packing, width = 640).
    depth3, n3 = 10, 24
    x3 = jax.random.randint(jax.random.PRNGKey(2), (n3,), 0, depth3, dtype=jnp.int32)
    out3 = jax.block_until_ready(one_hot(x3, depth3))
    assert jnp.array_equal(out3, jnp.eye(depth3, dtype=jnp.float32)[x3])

    # 4) Tiled path (larger depth, exact (N, depth) writes, no slicing).
    depth4, n4 = 300, 16
    x4 = jax.random.randint(jax.random.PRNGKey(3), (n4,), 0, depth4, dtype=jnp.int32)
    out4 = jax.block_until_ready(one_hot(x4, depth4))
    assert jnp.array_equal(out4, jnp.eye(depth4, dtype=jnp.float32)[x4])

    print("KERNEL_OK")
</pallas_src>

<mosaic_0001>
module attributes {stable_mosaic.version = 11 : i64} {
  func.func @_one_hot_packed_kernel(%arg0: i32, %arg1: memref<1x8xi32, #tpu.memory_space<vmem>>, %arg2: memref<8x128xf32, #tpu.memory_space<vmem>>, %arg3: memref<1x128xf32, #tpu.memory_space<vmem>>, %arg4: memref<1x128xf32, #tpu.memory_space<vmem>>) attributes {dimension_semantics = [#tpu.dimension_semantics<parallel>], iteration_bounds = array<i64: 1>, scalar_prefetch = 0 : i64, scratch_operands = 0 : i64, tpu.core_type = #tpu.core_type<tc>, window_params = [{transform_indices = @transform_0, window_bounds = array<i64: 1, 8>}, {pipeline_mode = #tpu.pipeline_mode<synchronous>, transform_indices = @transform_1, window_bounds = array<i64: 8, 128>}, {pipeline_mode = #tpu.pipeline_mode<synchronous>, transform_indices = @transform_2, window_bounds = array<i64: 1, 128>}, {transform_indices = @transform_3, window_bounds = array<i64: 1, 128>}]} {
    %c0 = arith.constant 0 : index
    %c0_0 = arith.constant 0 : index
    %0 = vector.load %arg1[%c0, %c0_0] : memref<1x8xi32, #tpu.memory_space<vmem>>, vector<1x8xi32>
    %c0_i32 = arith.constant 0 : i32
    %1 = vector.broadcast %c0_i32 : i32 to vector<1x8xi32>
    %2 = arith.cmpi sge, %0, %1 : vector<1x8xi32>
    %c16_i32 = arith.constant 16 : i32
    %3 = vector.broadcast %c16_i32 : i32 to vector<1x8xi32>
    %4 = arith.cmpi slt, %0, %3 : vector<1x8xi32>
    %5 = arith.andi %2, %4 : vector<1x8xi1>
    %c16_i32_1 = arith.constant 16 : i32
    %6 = vector.broadcast %c16_i32_1 : i32 to vector<1x8xi32>
    %7 = arith.select %5, %0, %6 : vector<1x8xi1>, vector<1x8xi32>
    %8 = arith.sitofp %7 : vector<1x8xi32> to vector<1x8xf32>
    %c0_2 = arith.constant 0 : index
    %c0_3 = arith.constant 0 : index
    %9 = vector.load %arg2[%c0_2, %c0_3] : memref<8x128xf32, #tpu.memory_space<vmem>>, vector<8x128xf32>
    %cst = arith.constant dense<0.000000e+00> : vector<1x128xf32>
    %10 = tpu.matmul %8, %9, %cst {dimension_numbers = #tpu.dot_dimension_numbers<[1], [0], [0], [1], [0, 0, 1, 1], [], []>} : vector<1x8xf32>, vector<8x128xf32>, vector<1x128xf32> -> vector<1x128xf32>
    %c0_4 = arith.constant 0 : index
    %c0_5 = arith.constant 0 : index
    %11 = vector.load %arg3[%c0_4, %c0_5] : memref<1x128xf32, #tpu.memory_space<vmem>>, vector<1x128xf32>
    %12 = arith.cmpf oeq, %10, %11 : vector<1x128xf32>
    %13 = arith.extui %12 : vector<1x128xi1> to vector<1x128xi32>
    %14 = arith.sitofp %13 : vector<1x128xi32> to vector<1x128xf32>
    %c0_6 = arith.constant 0 : index
    %c0_7 = arith.constant 0 : index
    %15 = vector.load %arg4[%c0_6, %c0_7] : memref<1x128xf32, #tpu.memory_space<vmem>>, vector<1x128xf32>
    tpu.vector_store %arg4[%c0_6, %c0_7], %14 {strides = array<i32>} : memref<1x128xf32, #tpu.memory_space<vmem>>, vector<1x128xf32>,
    return
  }
  func.func @transform_0(%arg0: i32) -> (i32, i32) {
    %c0_i32 = arith.constant 0 : i32
    %c0_i32_0 = arith.constant 0 : i32
    return %arg0, %c0_i32 : i32, i32
  }
  func.func @transform_1(%arg0: i32) -> (i32, i32) {
    %c0_i32 = arith.constant 0 : i32
    %c0_i32_0 = arith.constant 0 : i32
    %c0_i32_1 = arith.constant 0 : i32
    return %c0_i32, %c0_i32_0 : i32, i32
  }
  func.func @transform_2(%arg0: i32) -> (i32, i32) {
    %c0_i32 = arith.constant 0 : i32
    %c0_i32_0 = arith.constant 0 : i32
    %c0_i32_1 = arith.constant 0 : i32
    return %c0_i32, %c0_i32_0 : i32, i32
  }
  func.func @transform_3(%arg0: i32) -> (i32, i32) {
    %c0_i32 = arith.constant 0 : i32
    %c0_i32_0 = arith.constant 0 : i32
    return %arg0, %c0_i32 : i32, i32
  }
}

</mosaic_0001>

<llo_original>
// kernel: tpu_custom_call.1
$region0: #{tpu_custom_call.1}
  #allocation0 [shape = 'u32[]', space=smem, size = 0x4, offset = 0x4, fixed_abs, tag = 'smem constant byte address 0x4 - core index']
  #allocation1 [shape = 'u32[144,128]{1,0:T(1,128)}', space=vmem, size = 0x12000, scoped, tag = 'internal scratch']
  %s0 = inlined_call_operand.hbm [shape: s32[1,8], index: 0, kind: input, shape index: {}]
  %s1 = inlined_call_operand.hbm [shape: f32[8,128], index: 1, kind: input, shape index: {}]
  %s2 = inlined_call_operand.vmem [shape: f32[1,128], index: 2, kind: input, shape index: {}]
  %s3 = inlined_call_operand.hbm [shape: f32[1,128], index: 3, kind: output, shape index: {}]
  %s4 = sld [smem:[#allocation0]]
  $region30: #{tpu_custom_call.1} parent=0
    _
  %s6 = ssub.s32 1, %s4
  %s7 = scalar_select 0, %s6, %s4
  $region1: #{tpu_custom_call.1} parent=0
    #allocation2 [shape = 'u8[512]{0}', space=vmem, size = 0x400, scoped, tag = 'input window, operand 0, single buffered']
    #allocation3 [shape = 's32[1]{0}', space=sflag, size = 0x4, scoped, tag = 'scoped memory for tpu_custom_call.1']
    #allocation4 [shape = 's32[1]{0}', space=sflag, size = 0x4, scoped, tag = 'scoped memory for tpu_custom_call.1']
    #allocation5 [shape = 'u8[4096]{0}', space=vmem, size = 0x1000, scoped, tag = 'input window, operand 1, single buffered']
    #allocation6 [shape = 's32[1]{0}', space=sflag, size = 0x4, scoped, tag = 'scoped memory for tpu_custom_call.1']
    #allocation7 [shape = 'u8[512]{0}', space=vmem, size = 0x400, scoped, tag = 'output window, operand 0, single buffered']
    %8 = vsyncpa [#allocation3], 0
    %9 = vsyncpa [#allocation6], 0
    %10 = vsyncpa [#allocation4], 0
    // Predicated region
    $region2: #{tpu_custom_call.1} parent=1 // pred_check
      _
    $region3: #{tpu_custom_call.1} parent=1 // pred_check_branch
      %12 = sbr.rel (0) target = $region5
    $region4: #{tpu_custom_call.1} parent=1 // pred_region
      %s14 = ssub.s32 16, 16
      %15 = vsyncadd [#allocation3], %s14
      %s17 = sshll.u32 [#allocation2], 4
      %s18 = int_to_ptr.vmem [resolvable:$true] %s17
      %20 = dma.hbm_to_vmem [thread:$0]  %s0, 16, %s18, [#allocation3]
    $region5: #{tpu_custom_call.1} parent=1 // pred_fallthru
      _
    // Predicated region
    $region6: #{tpu_custom_call.1} parent=1 // pred_check
      _
    $region7: #{tpu_custom_call.1} parent=1 // pred_check_branch
      %22 = sbr.rel (0) target = $region9
    $region8: #{tpu_custom_call.1} parent=1 // pred_region
      %s24 = ssub.s32 128, 128
      %25 = vsyncadd [#allocation6], %s24
      %s27 = sshll.u32 [#allocation5], 4
      %s28 = int_to_ptr.vmem [resolvable:$true] %s27
      %30 = dma.hbm_to_vmem [thread:$0]  %s1, 128, %s28, [#allocation6]
    $region9: #{tpu_custom_call.1} parent=1 // pred_fallthru
      _
    // Predicated region
    $region10: #{tpu_custom_call.1} parent=1 // pred_check
      _
    $region11: #{tpu_custom_call.1} parent=1 // pred_check_branch
      %32 = sbr.rel (0) target = $region13
    $region12: #{tpu_custom_call.1} parent=1 // pred_region
      _
    $region13: #{tpu_custom_call.1} parent=1 // pred_fallthru
      _
    // Predicated region
    $region14: #{tpu_custom_call.1} parent=1 // pred_check
      _
    $region15: #{tpu_custom_call.1} parent=1 // pred_check_branch
      %34 = sbr.rel (0) target = $region17
    $region16: #{tpu_custom_call.1} parent=1 // pred_region
      %35 = dma.done [#allocation3], 16
    $region17: #{tpu_custom_call.1} parent=1 // pred_fallthru
      _
    // Predicated region
    $region18: #{tpu_custom_call.1} parent=1 // pred_check
      _
    $region19: #{tpu_custom_call.1} parent=1 // pred_check_branch
      %37 = sbr.rel (0) target = $region21
    $region20: #{tpu_custom_call.1} parent=1 // pred_region
      %38 = dma.done [#allocation6], 128
    $region21: #{tpu_custom_call.1} parent=1 // pred_fallthru
      _
    %v39 = vld [vmem:[#allocation2] sm:$0x1]
    %vm40 = vcmp.ge.s32.totalorder %v39, 0
    %vm41 = vcmp.lt.s32.totalorder %v39, 16
    %vm42 = vmand %vm40, %vm41
    %v43 = vsel %vm42, %v39, 16
    %v44 = vcvt.s32.f32 %v43
    %v45 = vld [vmem:[#allocation5] sm:$0xff]
    %vm46 = vcmask 64512
    %v48 = vsel %vm46, %v44, 0
    %50 = vmatprep.subr.mxu0 0.0
    %51 = vmatpush1.msra.mxu0 %v45
    %52 = vmatprep.subr.mxu0 0.0
    %53 = vmatpush1.msra.mxu0 0.0
    %54 = vmatprep.subr.mxu0 0.0
    %55 = vmatpush1.msra.mxu0 0.0
    %56 = vmatprep.subr.mxu0 0.0
    %57 = vmatpush1.msra.mxu0 0.0
    %58 = vmatprep.subr.mxu0 0.0
    %59 = vmatpush1.msra.mxu0 0.0
    %60 = vmatprep.subr.mxu0 0.0
    %61 = vmatpush1.msra.mxu0 0.0
    %62 = vmatprep.subr.mxu0 0.0
    %63 = vmatpush1.msra.mxu0 0.0
    %64 = vmatprep.subr.mxu0 0.0
    %65 = vmatpush1.msra.mxu0 0.0
    %66 = vmatprep.subr.mxu0 0.0
    %67 = vmatpush1.msra.mxu0 0.0
    %68 = vmatprep.subr.mxu0 0.0
    %69 = vmatpush1.msra.mxu0 0.0
    %70 = vmatprep.subr.mxu0 0.0
    %71 = vmatpush1.msra.mxu0 0.0
    %72 = vmatprep.subr.mxu0 0.0
    %73 = vmatpush1.msra.mxu0 0.0
    %74 = vmatprep.subr.mxu0 0.0
    %75 = vmatpush1.msra.mxu0 0.0
    %76 = vmatprep.subr.mxu0 0.0
    %77 = vmatpush1.msra.mxu0 0.0
    %78 = vmatprep.subr.mxu0 0.0
    %79 = vmatpush1.msra.mxu0 0.0
    %80 = vmatprep.subr.mxu0 0.0
    %81 = vmatpush1.msra.mxu0 0.0
    %82 = vmatprep.subr.mxu0 0.0
    %83 = vmatpush1.msra.mxu0 0.0
    %84 = vmatprep.subr.mxu0 0.0
    %85 = vmatpush1.msra.mxu0 0.0
    %86 = vmatprep.subr.mxu0 0.0
    %87 = vmatpush1.msra.mxu0 0.0
    %88 = vmatprep.subr.mxu0 0.0
    %89 = vmatpush1.msra.mxu0 0.0
    %90 = vmatprep.subr.mxu0 0.0
    %91 = vmatpush1.msra.mxu0 0.0
    %92 = vmatprep.subr.mxu0 0.0
    %93 = vmatpush1.msra.mxu0 0.0
    %94 = vmatprep.subr.mxu0 0.0
    %95 = vmatpush1.msra.mxu0 0.0
    %96 = vmatprep.subr.mxu0 0.0
    %97 = vmatpush1.msra.mxu0 0.0
    %98 = vmatprep.subr.mxu0 0.0
    %99 = vmatpush1.msra.mxu0 0.0
    %100 = vmatprep.subr.mxu0 0.0
    %101 = vmatpush1.msra.mxu0 0.0
    %102 = vmatprep.subr.mxu0 0.0
    %103 = vmatpush1.msra.mxu0 0.0
    %104 = vmatprep.subr.mxu0 0.0
    %105 = vmatpush1.msra.mxu0 0.0
    %106 = vmatprep.subr.mxu0 0.0
    %107 = vmatpush1.msra.mxu0 0.0
    %108 = vmatprep.subr.mxu0 0.0
    %109 = vmatpush1.msra.mxu0 0.0
    %110 = vmatprep.subr.mxu0 0.0
    %111 = vmatpush1.msra.mxu0 0.0
    %112 = vmatprep.subr.mxu0 0.0
    %113 = vmatpush1.msra.mxu0 0.0
    %114 = vmatprep.mubr.f32.mxu0 0.0
    %115 = vmatmul.mubr.f32.gmra.mrb[0].mxu0 %v48
    %v116 = vpop.f32.mrb[0].mxu0
    %v117 = vadd.f32 0.0, %v116
    %v118 = vpop.f32.mrb[0].mxu0
    %119 = vdwg.mxu0
    %v120 = vld [vmem:[%s2] sm:$0x1]
    %vm121 = vcmp.eq.f32.partialorder %v117, %v120
    %v122 = vsel %vm121, 1, 0
    %v123 = vcvt.s32.f32 %v122
    %124 = vst [vmem:[#allocation7] sm:$0x1] %v123
    // Predicated region
    $region22: #{tpu_custom_call.1} parent=1 // pred_check
      _
    $region23: #{tpu_custom_call.1} parent=1 // pred_check_branch
      %126 = sbr.rel (0) target = $region25
    $region24: #{tpu_custom_call.1} parent=1 // pred_region
      %s128 = ssub.s32 16, 16
      %129 = vsyncadd [#allocation4], %s128
      %s131 = sshll.u32 [#allocation7], 4
      %s132 = int_to_ptr.vmem [resolvable:$true] %s131
      %134 = dma.vmem_to_hbm [thread:$0]  %s132, 16, %s3, [#allocation4]
    $region25: #{tpu_custom_call.1} parent=1 // pred_fallthru
      _
    // Predicated region
    $region26: #{tpu_custom_call.1} parent=1 // pred_check
      _
    $region27: #{tpu_custom_call.1} parent=1 // pred_check_branch
      %136 = sbr.rel (0) target = $region29
    $region28: #{tpu_custom_call.1} parent=1 // pred_region
      %137 = dma.done [#allocation4], 16
    $region29: #{tpu_custom_call.1} parent=1 // pred_fallthru
      _
    %138 = vsyncpa [#allocation3], 1
    %139 = vsyncpa [#allocation6], 1
    %140 = vsyncpa [#allocation4], 1

</llo_original>
